<compile_context>
chip_gen: v7x
topology: tpu7x:2x2x1
jax: 0.10.0
libtpu: 0.0.40
codegen_flags: <defaults>
</compile_context>

<pallas_src>
import math

import jax
import jax.numpy as jnp
from jax import lax
from jax.experimental import pallas as pl
from jax.experimental.pallas import tpu as pltpu

# Small shapes consistent with the module (real defaults are 4096 / 256).
IN_DIM = 4
HIDDEN_DIM = 32
BOTTLENECK_DIM = 16
BN_EPS = 1e-5
_INV_SQRT2 = 1.0 / math.sqrt(2.0)
_MAX_TILE = 16384  # pixels per lane tile; double-buffered in+out ~ 2.5 MiB @ 16K


def _gelu(h):
    """Exact erf GELU (matches torch.nn.GELU default)."""
    return 0.5 * h * (1.0 + lax.erf(h * _INV_SQRT2))


def _pick_tile(hw):
    """Whole HW if it fits, else largest 128-multiple divisor, else ragged cap."""
    if hw <= _MAX_TILE:
        return hw                              # full last dim is always legal
    best = None
    t = 128
    while t <= _MAX_TILE:
        if hw % t == 0:
            best = t
        t += 128
    return best if best is not None else _MAX_TILE   # ragged last tile -> masked


def _resident_spec3(arr):
    """Full-array block, constant index map, for a 3-axis grid (DMA'd once)."""
    zeros = (0,) * arr.ndim
    return pl.BlockSpec(arr.shape, lambda s, n, t: zeros)


def _resident_spec2(arr):
    """Full-array block, constant index map, for a 2-axis grid (DMA'd once)."""
    zeros = (0,) * arr.ndim
    return pl.BlockSpec(arr.shape, lambda n, t: zeros)


# ----------------------------- pass 1: BN statistics -------------------------
def _make_stats_kernel(hw, tile, inv_m):
    ragged = (hw % tile) != 0

    def kernel(x_ref, w1_ref, w2_ref, p1_ref, stats_ref):
        stage = pl.program_id(0)
        n = pl.program_id(1)
        t = pl.program_id(2)

        @pl.when((stage == 0) & (n == 0) & (t == 0))
        def _init():
            stats_ref[...] = jnp.zeros(stats_ref.shape, stats_ref.dtype)

        x = x_ref[...]                # (IN_DIM, tile) f32
        b1 = p1_ref[0]                # (HIDDEN, 1)
        g1 = p1_ref[1]
        be1 = p1_ref[2]
        b2 = p1_ref[3]

        if ragged:
            lane = lax.broadcasted_iota(jnp.int32, (1, tile), 1)
            valid = (t * tile + lane) < hw

            def _masked(v):
                return jnp.where(valid, v, 0.0)
        else:
            def _masked(v):
                return v

        @pl.when(stage == 0)
        def _layer1_stats():
            h1 = jnp.dot(w1_ref[...], x, preferred_element_type=jnp.float32) + b1
            hm = _masked(h1)
            stats_ref[0] += jnp.sum(hm, axis=1, keepdims=True)
            stats_ref[1] += jnp.sum(hm * hm, axis=1, keepdims=True)

        @pl.when(stage == 1)
        def _layer2_stats():
            # BN1 folded into conv1 (tiny (32,) vector math once per step).
            mean1 = stats_ref[0] * inv_m
            var1 = jnp.maximum(stats_ref[1] * inv_m - mean1 * mean1, 0.0)
            scale1 = g1 * lax.rsqrt(var1 + BN_EPS)
            shift1 = be1 - mean1 * scale1
            w1f = scale1 * w1_ref[...]
            b1f = scale1 * b1 + shift1
            a1 = _gelu(jnp.dot(w1f, x, preferred_element_type=jnp.float32) + b1f)
            h2 = jnp.dot(w2_ref[...], a1, preferred_element_type=jnp.float32) + b2
            hm = _masked(h2)
            stats_ref[2] += jnp.sum(hm, axis=1, keepdims=True)
            stats_ref[3] += jnp.sum(hm * hm, axis=1, keepdims=True)

    return kernel


# ----------------------------- pass 2: emit (parallel) -----------------------
def _emit_kernel(x_ref, w1_ref, w2_ref, w3_ref, bvec_ref, b3_ref, o_ref):
    x = x_ref[...]                                                 # (IN_DIM, tile)
    a1 = _gelu(jnp.dot(w1_ref[...], x, preferred_element_type=jnp.float32)
               + bvec_ref[0])
    a2 = _gelu(jnp.dot(w2_ref[...], a1, preferred_element_type=jnp.float32)
               + bvec_ref[1])
    y = jnp.dot(w3_ref[...], a2, preferred_element_type=jnp.float32) + b3_ref[...]
    o_ref[...] = y.astype(o_ref.dtype)


# ----------------------------- wrapper ---------------------------------------
def dino_head2d_forward(x_nchw, params):
    """x_nchw: (N, C, H, W) float32 -> (N, bottleneck_dim, H, W) float32."""
    (w1, b1, g1, be1, w2, b2, g2, be2, w3, b3) = params
    N, C, H, W = x_nchw.shape
    assert C == IN_DIM
    HW = H * W
    x = x_nchw.reshape(N, C, HW)          # pure reshape: channels->sublanes, pixels->lanes
    tile = _pick_tile(HW)
    n_tiles = pl.cdiv(HW, tile)
    inv_m = 1.0 / float(N * HW)

    # -------- pass 1: batch stats of conv1/conv2 pre-activations -------------
    p1 = jnp.stack([b1, g1, be1, b2], axis=0)           # (4, HIDDEN, 1) packed params
    stats = pl.pallas_call(
        _make_stats_kernel(HW, tile, inv_m),
        out_shape=jax.ShapeDtypeStruct((4, HIDDEN_DIM, 1), jnp.float32),
        grid=(2, N, n_tiles),
        in_specs=[pl.BlockSpec((None, C, tile), lambda s, n, t: (n, 0, t)),
                  _resident_spec3(w1),
                  _resident_spec3(w2),
                  _resident_spec3(p1)],
        out_specs=pl.BlockSpec((4, HIDDEN_DIM, 1), lambda s, n, t: (0, 0, 0)),
        compiler_params=pltpu.CompilerParams(
            dimension_semantics=("arbitrary", "arbitrary", "arbitrary"),
            vmem_limit_bytes=32 * 1024 * 1024),
    )(x, w1, w2, p1)

    # -------- fold BN1/BN2 into conv1/conv2 (tiny vectors, plain XLA) --------
    def _fold(w, b, g, be, s, ssq):
        mean = s * inv_m
        var = jnp.maximum(ssq * inv_m - mean * mean, 0.0)
        scale = g * lax.rsqrt(var + BN_EPS)
        shift = be - mean * scale
        return scale * w, scale * b + shift

    w1f, b1f = _fold(w1, b1, g1, be1, stats[0], stats[1])
    w2f, b2f = _fold(w2, b2, g2, be2, stats[2], stats[3])
    bvec = jnp.stack([b1f, b2f], axis=0)                 # (2, HIDDEN, 1)

    # -------- pass 2: fully parallel emit (dual-TC friendly on v7x) ----------
    out = pl.pallas_call(
        _emit_kernel,
        out_shape=jax.ShapeDtypeStruct((N, BOTTLENECK_DIM, HW), jnp.float32),
        grid=(N, n_tiles),
        in_specs=[pl.BlockSpec((None, C, tile), lambda n, t: (n, 0, t)),
                  _resident_spec2(w1f),
                  _resident_spec2(w2f),
                  _resident_spec2(w3),
                  _resident_spec2(bvec),
                  _resident_spec2(b3)],
        out_specs=pl.BlockSpec((None, BOTTLENECK_DIM, tile), lambda n, t: (n, 0, t)),
        compiler_params=pltpu.CompilerParams(
            dimension_semantics=("parallel", "parallel"),
            vmem_limit_bytes=32 * 1024 * 1024),
    )(x, w1f, w2f, w3, bvec, b3)

    return out.reshape(N, BOTTLENECK_DIM, H, W)


# ----------------------------- params / reference ----------------------------
def _trunc_normal(key, shape, std=0.02):
    return jax.random.truncated_normal(key, -2.0, 2.0, shape, jnp.float32) * std


def init_params(key):
    k1, k2, k3 = jax.random.split(key, 3)
    # Conv weights stored as (C_out, C_in) (PyTorch (out, in, 1, 1) squeezed).
    w1 = _trunc_normal(k1, (HIDDEN_DIM, IN_DIM))
    b1 = jnp.zeros((HIDDEN_DIM, 1), jnp.float32)
    g1 = jnp.ones((HIDDEN_DIM, 1), jnp.float32)     # BN gamma init = 1
    be1 = jnp.zeros((HIDDEN_DIM, 1), jnp.float32)   # BN beta init = 0

    w2 = _trunc_normal(k2, (HIDDEN_DIM, HIDDEN_DIM))
    b2 = jnp.zeros((HIDDEN_DIM, 1), jnp.float32)
    g2 = jnp.ones((HIDDEN_DIM, 1), jnp.float32)
    be2 = jnp.zeros((HIDDEN_DIM, 1), jnp.float32)

    w3 = _trunc_normal(k3, (BOTTLENECK_DIM, HIDDEN_DIM))
    b3 = jnp.zeros((BOTTLENECK_DIM, 1), jnp.float32)

    return (w1, b1, g1, be1, w2, b2, g2, be2, w3, b3)


def reference_forward(x_nchw, params):
    """Pure-JAX reference of the same math (torch training-mode BN + erf GELU)."""
    (w1, b1, g1, be1, w2, b2, g2, be2, w3, b3) = params
    N, C, H, W = x_nchw.shape
    x = x_nchw.reshape(N, C, H * W)
    hp = lax.Precision.HIGHEST

    def conv(w, b, h):
        return jnp.einsum('oc,ncm->nom', w, h, precision=hp) + b[None]

    def bn_gelu(h, g, be):
        m = jnp.mean(h, axis=(0, 2), keepdims=True)
        v = jnp.mean((h - m) ** 2, axis=(0, 2), keepdims=True)
        h = (h - m) / jnp.sqrt(v + BN_EPS) * g[None] + be[None]
        return 0.5 * h * (1.0 + lax.erf(h * _INV_SQRT2))

    h = bn_gelu(conv(w1, b1, x), g1, be1)
    h = bn_gelu(conv(w2, b2, h), g2, be2)
    y = conv(w3, b3, h)
    return y.reshape(N, BOTTLENECK_DIM, H, W)


if __name__ == "__main__":
    key = jax.random.PRNGKey(0)
    kx, kp = jax.random.split(key)

    x = jax.random.normal(kx, (2, IN_DIM, 16, 16), jnp.float32)  # NCHW
    params = init_params(kp)

    out = jax.block_until_ready(dino_head2d_forward(x, params))
    ref = reference_forward(x, params)

    assert out.shape == (2, BOTTLENECK_DIM, 16, 16)
    err = float(jnp.max(jnp.abs(out - ref)))
    assert err < 1e-3, f"max abs err {err}"

    print("KERNEL_OK")
</pallas_src>

<mosaic_0001>
module attributes {stable_mosaic.version = 11 : i64} {
  func.func @kernel(%arg0: i32, %arg1: i32, %arg2: i32, %arg3: memref<1x4x256xf32, #tpu.memory_space<vmem>>, %arg4: memref<32x4xf32, #tpu.memory_space<vmem>>, %arg5: memref<32x32xf32, #tpu.memory_space<vmem>>, %arg6: memref<4x32x1xf32, #tpu.memory_space<vmem>>, %arg7: memref<4x32x1xf32, #tpu.memory_space<vmem>>) attributes {dimension_semantics = [#tpu.dimension_semantics<arbitrary>, #tpu.dimension_semantics<arbitrary>, #tpu.dimension_semantics<arbitrary>], iteration_bounds = array<i64: 2, 2, 1>, scalar_prefetch = 0 : i64, scratch_operands = 0 : i64, tpu.core_type = #tpu.core_type<tc>, window_params = [{transform_indices = @transform_0, window_bounds = array<i64: 1, 4, 256>}, {pipeline_mode = #tpu.pipeline_mode<synchronous>, transform_indices = @transform_1, window_bounds = array<i64: 32, 4>}, {pipeline_mode = #tpu.pipeline_mode<synchronous>, transform_indices = @transform_2, window_bounds = array<i64: 32, 32>}, {pipeline_mode = #tpu.pipeline_mode<synchronous>, transform_indices = @transform_3, window_bounds = array<i64: 4, 32, 1>}, {pipeline_mode = #tpu.pipeline_mode<synchronous>, transform_indices = @transform_4, window_bounds = array<i64: 4, 32, 1>}]} {
    %c0_i32 = arith.constant 0 : i32
    %0 = arith.cmpi eq, %arg0, %c0_i32 : i32
    %c0_i32_0 = arith.constant 0 : i32
    %1 = arith.cmpi eq, %arg1, %c0_i32_0 : i32
    %2 = arith.andi %0, %1 : i1
    %c0_i32_1 = arith.constant 0 : i32
    %3 = arith.cmpi eq, %arg2, %c0_i32_1 : i32
    %4 = arith.andi %2, %3 : i1
    %5 = arith.extui %4 : i1 to i32
    %c0_i32_2 = arith.constant 0 : i32
    %6 = arith.cmpi ne, %5, %c0_i32_2 : i32
    scf.if %6 {
      %cst = arith.constant 0.000000e+00 : f32
      %23 = vector.broadcast %cst : f32 to vector<4x32x1xf32>
      %c0_17 = arith.constant 0 : index
      %c0_18 = arith.constant 0 : index
      %c0_19 = arith.constant 0 : index
      %24 = vector.load %arg7[%c0_17, %c0_18, %c0_19] : memref<4x32x1xf32, #tpu.memory_space<vmem>>, vector<4x32x1xf32>
      tpu.vector_store %arg7[%c0_17, %c0_18, %c0_19], %23 {strides = array<i32>} : memref<4x32x1xf32, #tpu.memory_space<vmem>>, vector<4x32x1xf32>,
    } else {
    }
    %c0 = arith.constant 0 : index
    %c0_3 = arith.constant 0 : index
    %c0_4 = arith.constant 0 : index
    %7 = vector.load %arg3[%c0, %c0_3, %c0_4] : memref<1x4x256xf32, #tpu.memory_space<vmem>>, vector<1x4x256xf32>
    %8 = vector.shape_cast %7 : vector<1x4x256xf32> to vector<4x256xf32>
    %c0_5 = arith.constant 0 : index
    %c0_6 = arith.constant 0 : index
    %c0_7 = arith.constant 0 : index
    %9 = vector.load %arg6[%c0_5, %c0_6, %c0_7] : memref<4x32x1xf32, #tpu.memory_space<vmem>>, vector<1x32x1xf32>
    %10 = vector.shape_cast %9 : vector<1x32x1xf32> to vector<32x1xf32>
    %c1 = arith.constant 1 : index
    %c0_8 = arith.constant 0 : index
    %c0_9 = arith.constant 0 : index
    %11 = vector.load %arg6[%c1, %c0_8, %c0_9] : memref<4x32x1xf32, #tpu.memory_space<vmem>>, vector<1x32x1xf32>
    %12 = vector.shape_cast %11 : vector<1x32x1xf32> to vector<32x1xf32>
    %c2 = arith.constant 2 : index
    %c0_10 = arith.constant 0 : index
    %c0_11 = arith.constant 0 : index
    %13 = vector.load %arg6[%c2, %c0_10, %c0_11] : memref<4x32x1xf32, #tpu.memory_space<vmem>>, vector<1x32x1xf32>
    %14 = vector.shape_cast %13 : vector<1x32x1xf32> to vector<32x1xf32>
    %c3 = arith.constant 3 : index
    %c0_12 = arith.constant 0 : index
    %c0_13 = arith.constant 0 : index
    %15 = vector.load %arg6[%c3, %c0_12, %c0_13] : memref<4x32x1xf32, #tpu.memory_space<vmem>>, vector<1x32x1xf32>
    %16 = vector.shape_cast %15 : vector<1x32x1xf32> to vector<32x1xf32>
    %c0_i32_14 = arith.constant 0 : i32
    %17 = arith.cmpi eq, %arg0, %c0_i32_14 : i32
    %18 = arith.extui %17 : i1 to i32
    %c0_i32_15 = arith.constant 0 : i32
    %19 = arith.cmpi ne, %18, %c0_i32_15 : i32
    scf.if %19 {
      %c0_17 = arith.constant 0 : index
      %c0_18 = arith.constant 0 : index
      %23 = vector.load %arg4[%c0_17, %c0_18] : memref<32x4xf32, #tpu.memory_space<vmem>>, vector<32x4xf32>
      %cst = arith.constant dense<0.000000e+00> : vector<32x256xf32>
      %24 = tpu.matmul %23, %8, %cst {dimension_numbers = #tpu.dot_dimension_numbers<[1], [0], [0], [1], [0, 0, 1, 1], [], []>} : vector<32x4xf32>, vector<4x256xf32>, vector<32x256xf32> -> vector<32x256xf32>
      %25 = vector.broadcast %10 : vector<32x1xf32> to vector<32x256xf32>
      %26 = arith.addf %24, %25 : vector<32x256xf32>
      %c0_19 = arith.constant 0 : index
      %c0_20 = arith.constant 0 : index
      %c0_21 = arith.constant 0 : index
      %27 = vector.load %arg7[%c0_19, %c0_20, %c0_21] : memref<4x32x1xf32, #tpu.memory_space<vmem>>, vector<1x32x1xf32>
      %28 = vector.shape_cast %27 : vector<1x32x1xf32> to vector<32x1xf32>
      %cst_22 = arith.constant dense<0.000000e+00> : vector<32xf32>
      %29 = vector.multi_reduction <add>, %26, %cst_22 [1] : vector<32x256xf32> to vector<32xf32>
      %30 = vector.shape_cast %29 : vector<32xf32> to vector<32x1xf32>
      %31 = arith.addf %28, %30 : vector<32x1xf32>
      %c0_23 = arith.constant 0 : index
      %c0_24 = arith.constant 0 : index
      %c0_25 = arith.constant 0 : index
      %32 = vector.load %arg7[%c0_23, %c0_24, %c0_25] : memref<4x32x1xf32, #tpu.memory_space<vmem>>, vector<1x32x1xf32>
      %33 = vector.shape_cast %32 : vector<1x32x1xf32> to vector<32x1xf32>
      %34 = vector.shape_cast %31 : vector<32x1xf32> to vector<1x32x1xf32>
      tpu.vector_store %arg7[%c0_23, %c0_24, %c0_25], %34 {strides = array<i32>} : memref<4x32x1xf32, #tpu.memory_space<vmem>>, vector<1x32x1xf32>,
      %c1_26 = arith.constant 1 : index
      %c0_27 = arith.constant 0 : index
      %c0_28 = arith.constant 0 : index
      %35 = vector.load %arg7[%c1_26, %c0_27, %c0_28] : memref<4x32x1xf32, #tpu.memory_space<vmem>>, vector<1x32x1xf32>
      %36 = vector.shape_cast %35 : vector<1x32x1xf32> to vector<32x1xf32>
      %37 = arith.mulf %26, %26 : vector<32x256xf32>
      %cst_29 = arith.constant dense<0.000000e+00> : vector<32xf32>
      %38 = vector.multi_reduction <add>, %37, %cst_29 [1] : vector<32x256xf32> to vector<32xf32>
      %39 = vector.shape_cast %38 : vector<32xf32> to vector<32x1xf32>
      %40 = arith.addf %36, %39 : vector<32x1xf32>
      %c1_30 = arith.constant 1 : index
      %c0_31 = arith.constant 0 : index
      %c0_32 = arith.constant 0 : index
      %41 = vector.load %arg7[%c1_30, %c0_31, %c0_32] : memref<4x32x1xf32, #tpu.memory_space<vmem>>, vector<1x32x1xf32>
      %42 = vector.shape_cast %41 : vector<1x32x1xf32> to vector<32x1xf32>
      %43 = vector.shape_cast %40 : vector<32x1xf32> to vector<1x32x1xf32>
      tpu.vector_store %arg7[%c1_30, %c0_31, %c0_32], %43 {strides = array<i32>} : memref<4x32x1xf32, #tpu.memory_space<vmem>>, vector<1x32x1xf32>,
    } else {
    }
    %c1_i32 = arith.constant 1 : i32
    %20 = arith.cmpi eq, %arg0, %c1_i32 : i32
    %21 = arith.extui %20 : i1 to i32
    %c0_i32_16 = arith.constant 0 : i32
    %22 = arith.cmpi ne, %21, %c0_i32_16 : i32
    scf.if %22 {
      %c0_17 = arith.constant 0 : index
      %c0_18 = arith.constant 0 : index
      %c0_19 = arith.constant 0 : index
      %23 = vector.load %arg7[%c0_17, %c0_18, %c0_19] : memref<4x32x1xf32, #tpu.memory_space<vmem>>, vector<1x32x1xf32>
      %24 = vector.shape_cast %23 : vector<1x32x1xf32> to vector<32x1xf32>
      %cst = arith.constant 0.001953125 : f32
      %25 = vector.broadcast %cst : f32 to vector<32x1xf32>
      %26 = arith.mulf %24, %25 : vector<32x1xf32>
      %c1_20 = arith.constant 1 : index
      %c0_21 = arith.constant 0 : index
      %c0_22 = arith.constant 0 : index
      %27 = vector.load %arg7[%c1_20, %c0_21, %c0_22] : memref<4x32x1xf32, #tpu.memory_space<vmem>>, vector<1x32x1xf32>
      %28 = vector.shape_cast %27 : vector<1x32x1xf32> to vector<32x1xf32>
      %cst_23 = arith.constant 0.001953125 : f32
      %29 = vector.broadcast %cst_23 : f32 to vector<32x1xf32>
      %30 = arith.mulf %28, %29 : vector<32x1xf32>
      %31 = arith.mulf %26, %26 : vector<32x1xf32>
      %32 = arith.subf %30, %31 : vector<32x1xf32>
      %cst_24 = arith.constant 0.000000e+00 : f32
      %33 = vector.broadcast %cst_24 : f32 to vector<32x1xf32>
      %34 = arith.maximumf %32, %33 : vector<32x1xf32>
      %cst_25 = arith.constant 9.99999974E-6 : f32
      %35 = vector.broadcast %cst_25 : f32 to vector<32x1xf32>
      %36 = arith.addf %34, %35 : vector<32x1xf32>
      %37 = math.rsqrt %36 : vector<32x1xf32>
      %38 = arith.mulf %12, %37 : vector<32x1xf32>
      %39 = arith.mulf %26, %38 : vector<32x1xf32>
      %40 = arith.subf %14, %39 : vector<32x1xf32>
      %c0_26 = arith.constant 0 : index
      %c0_27 = arith.constant 0 : index
      %41 = vector.load %arg4[%c0_26, %c0_27] : memref<32x4xf32, #tpu.memory_space<vmem>>, vector<32x4xf32>
      %42 = vector.broadcast %38 : vector<32x1xf32> to vector<32x4xf32>
      %43 = arith.mulf %42, %41 : vector<32x4xf32>
      %44 = arith.mulf %38, %10 : vector<32x1xf32>
      %45 = arith.addf %44, %40 : vector<32x1xf32>
      %cst_28 = arith.constant dense<0.000000e+00> : vector<32x256xf32>
      %46 = tpu.matmul %43, %8, %cst_28 {dimension_numbers = #tpu.dot_dimension_numbers<[1], [0], [0], [1], [0, 0, 1, 1], [], []>} : vector<32x4xf32>, vector<4x256xf32>, vector<32x256xf32> -> vector<32x256xf32>
      %47 = vector.broadcast %45 : vector<32x1xf32> to vector<32x256xf32>
      %48 = arith.addf %46, %47 : vector<32x256xf32>
      %cst_29 = arith.constant 5.000000e-01 : f32
      %49 = vector.broadcast %cst_29 : f32 to vector<32x256xf32>
      %50 = arith.mulf %49, %48 : vector<32x256xf32>
      %cst_30 = arith.constant 0.707106769 : f32
      %51 = vector.broadcast %cst_30 : f32 to vector<32x256xf32>
      %52 = arith.mulf %48, %51 : vector<32x256xf32>
      %53 = math.erf %52 : vector<32x256xf32>
      %cst_31 = arith.constant 1.000000e+00 : f32
      %54 = vector.broadcast %cst_31 : f32 to vector<32x256xf32>
      %55 = arith.addf %54, %53 : vector<32x256xf32>
      %56 = arith.mulf %50, %55 : vector<32x256xf32>
      %c0_32 = arith.constant 0 : index
      %c0_33 = arith.constant 0 : index
      %57 = vector.load %arg5[%c0_32, %c0_33] : memref<32x32xf32, #tpu.memory_space<vmem>>, vector<32x32xf32>
      %cst_34 = arith.constant dense<0.000000e+00> : vector<32x256xf32>
      %58 = tpu.matmul %57, %56, %cst_34 {dimension_numbers = #tpu.dot_dimension_numbers<[1], [0], [0], [1], [0, 0, 1, 1], [], []>} : vector<32x32xf32>, vector<32x256xf32>, vector<32x256xf32> -> vector<32x256xf32>
      %59 = vector.broadcast %16 : vector<32x1xf32> to vector<32x256xf32>
      %60 = arith.addf %58, %59 : vector<32x256xf32>
      %c2_35 = arith.constant 2 : index
      %c0_36 = arith.constant 0 : index
      %c0_37 = arith.constant 0 : index
      %61 = vector.load %arg7[%c2_35, %c0_36, %c0_37] : memref<4x32x1xf32, #tpu.memory_space<vmem>>, vector<1x32x1xf32>
      %62 = vector.shape_cast %61 : vector<1x32x1xf32> to vector<32x1xf32>
      %cst_38 = arith.constant dense<0.000000e+00> : vector<32xf32>
      %63 = vector.multi_reduction <add>, %60, %cst_38 [1] : vector<32x256xf32> to vector<32xf32>
      %64 = vector.shape_cast %63 : vector<32xf32> to vector<32x1xf32>
      %65 = arith.addf %62, %64 : vector<32x1xf32>
      %c2_39 = arith.constant 2 : index
      %c0_40 = arith.constant 0 : index
      %c0_41 = arith.constant 0 : index
      %66 = vector.load %arg7[%c2_39, %c0_40, %c0_41] : memref<4x32x1xf32, #tpu.memory_space<vmem>>, vector<1x32x1xf32>
      %67 = vector.shape_cast %66 : vector<1x32x1xf32> to vector<32x1xf32>
      %68 = vector.shape_cast %65 : vector<32x1xf32> to vector<1x32x1xf32>
      tpu.vector_store %arg7[%c2_39, %c0_40, %c0_41], %68 {strides = array<i32>} : memref<4x32x1xf32, #tpu.memory_space<vmem>>, vector<1x32x1xf32>,
      %c3_42 = arith.constant 3 : index
      %c0_43 = arith.constant 0 : index
      %c0_44 = arith.constant 0 : index
      %69 = vector.load %arg7[%c3_42, %c0_43, %c0_44] : memref<4x32x1xf32, #tpu.memory_space<vmem>>, vector<1x32x1xf32>
      %70 = vector.shape_cast %69 : vector<1x32x1xf32> to vector<32x1xf32>
      %71 = arith.mulf %60, %60 : vector<32x256xf32>
      %cst_45 = arith.constant dense<0.000000e+00> : vector<32xf32>
      %72 = vector.multi_reduction <add>, %71, %cst_45 [1] : vector<32x256xf32> to vector<32xf32>
      %73 = vector.shape_cast %72 : vector<32xf32> to vector<32x1xf32>
      %74 = arith.addf %70, %73 : vector<32x1xf32>
      %c3_46 = arith.constant 3 : index
      %c0_47 = arith.constant 0 : index
      %c0_48 = arith.constant 0 : index
      %75 = vector.load %arg7[%c3_46, %c0_47, %c0_48] : memref<4x32x1xf32, #tpu.memory_space<vmem>>, vector<1x32x1xf32>
      %76 = vector.shape_cast %75 : vector<1x32x1xf32> to vector<32x1xf32>
      %77 = vector.shape_cast %74 : vector<32x1xf32> to vector<1x32x1xf32>
      tpu.vector_store %arg7[%c3_46, %c0_47, %c0_48], %77 {strides = array<i32>} : memref<4x32x1xf32, #tpu.memory_space<vmem>>, vector<1x32x1xf32>,
    } else {
    }
    return
  }
  func.func @transform_0(%arg0: i32, %arg1: i32, %arg2: i32) -> (i32, i32, i32) {
    %c0_i32 = arith.constant 0 : i32
    %c0_i32_0 = arith.constant 0 : i32
    return %arg1, %c0_i32, %arg2 : i32, i32, i32
  }
  func.func @transform_1(%arg0: i32, %arg1: i32, %arg2: i32) -> (i32, i32) {
    %c0_i32 = arith.constant 0 : i32
    %c0_i32_0 = arith.constant 0 : i32
    %c0_i32_1 = arith.constant 0 : i32
    return %c0_i32, %c0_i32_0 : i32, i32
  }
  func.func @transform_2(%arg0: i32, %arg1: i32, %arg2: i32) -> (i32, i32) {
    %c0_i32 = arith.constant 0 : i32
    %c0_i32_0 = arith.constant 0 : i32
    %c0_i32_1 = arith.constant 0 : i32
    return %c0_i32, %c0_i32_0 : i32, i32
  }
  func.func @transform_3(%arg0: i32, %arg1: i32, %arg2: i32) -> (i32, i32, i32) {
    %c0_i32 = arith.constant 0 : i32
    %c0_i32_0 = arith.constant 0 : i32
    %c0_i32_1 = arith.constant 0 : i32
    %c0_i32_2 = arith.constant 0 : i32
    return %c0_i32, %c0_i32_0, %c0_i32_1 : i32, i32, i32
  }
  func.func @transform_4(%arg0: i32, %arg1: i32, %arg2: i32) -> (i32, i32, i32) {
    %c0_i32 = arith.constant 0 : i32
    %c0_i32_0 = arith.constant 0 : i32
    %c0_i32_1 = arith.constant 0 : i32
    %c0_i32_2 = arith.constant 0 : i32
    return %c0_i32, %c0_i32_0, %c0_i32_1 : i32, i32, i32
  }
}

</mosaic_0001>

<llo_original>
// kernel: tpu_custom_call.1
$region0: #{tpu_custom_call.1}
  #allocation0 [shape = 'u32[]', space=smem, size = 0x4, offset = 0x4, fixed_abs, tag = 'smem constant byte address 0x4 - core index']
  #allocation1 [shape = 'u32[144,128]{1,0:T(1,128)}', space=vmem, size = 0x12000, scoped, tag = 'internal scratch']
  %s0 = inlined_call_operand.vmem [shape: f32[2,4,256], index: 0, kind: input, shape index: {}]
  %s1 = inlined_call_operand.vmem [shape: f32[32,4], index: 1, kind: input, shape index: {}]
  %s2 = inlined_call_operand.vmem [shape: f32[32,32], index: 2, kind: input, shape index: {}]
  %s3 = inlined_call_operand.vmem [shape: f32[4,32,1], index: 3, kind: input, shape index: {}]
  %s4 = inlined_call_operand.vmem [shape: f32[4,32,1], index: 4, kind: output, shape index: {}]
  %s5 = sld [smem:[#allocation0]]
  $region61: #{tpu_custom_call.1} parent=0
    _
  %s7 = ssub.s32 1, %s5
  %s8 = scalar_select 0, %s7, %s5
  loop: start=0, step=1, limit=6
  $region2: #{tpu_custom_call.1} parent=0 // loop_pre_header
    _
  $region3: #{tpu_custom_call.1} parent=0 // loop_header
    %s10 = sphi 0, %s14
    %p11 = scmp.ge.s32.totalorder %s10, 6
    %s17 = sphi 0, %s36
    %s18 = sphi 0, %s32
    %s19 = sphi 0, %s28
    %s20 = sphi 0, %s17
    %s21 = sphi 0, %s18
    %s22 = sphi 0, %s19
    %s23 = sphi 0, %s20
    %s24 = sphi 0, %s21
    %s25 = sphi 0, %s22
    %s41 = sphi 0, %s43
    %s44 = sphi 0, %s41
    %s45 = sphi 0, %s44
    %s61 = sphi 0, %s45
    %s65 = sphi 0, %s65
    %s67 = sphi 0, %s65
    %s68 = sphi 0, %s67
    %s82 = sphi 0, %s68
    %s86 = sphi 0, %s86
    %s88 = sphi 0, %s86
    %s89 = sphi 0, %s88
    %s103 = sphi 0, %s89
    %s107 = sphi 0, %s107
    %s109 = sphi 0, %s107
    %s110 = sphi 0, %s109
    %s124 = sphi 0, %s110
    %s128 = sphi 0, %s128
    %s130 = sphi 0, %s128
    %s131 = sphi 0, %s130
    %s145 = sphi 0, %s131
  $region4: #{tpu_custom_call.1} parent=0 // loop_header_branch
    %13 = sbr.rel (%p11) target = $region8
  $region5: #{tpu_custom_call.1} parent=0 // loop_body
    %s15 = ssub.s32 %s10, 1
    %s16 = ssub.s32 %s10, 2
    %s26 = sadd.s32 1, %s19
    %p27 = scmp.ge.s32.totalorder %s26, 1
    %s28 = scalar_select %p27, 0, %s26
    %s29 = sadd.s32 1, %s18
    %s30 = scalar_select %p27, %s29, %s18
    %p31 = scmp.ge.s32.totalorder %s30, 2
    %s32 = scalar_select %p31, 0, %s30
    %s33 = sadd.s32 1, %s17
    %s34 = scalar_select %p31, %s33, %s17
    %p35 = scmp.ge.s32.totalorder %s34, 2
    %s36 = scalar_select %p35, 0, %s34
    %s37 = ssub.s32 %s18, %s32
    %s38 = ssub.s32 %s19, %s28
    %s39 = sor.u32 %s37, %s38
    %p40 = scmp.eq.s32.totalorder %s39, 0
    %s42 = sadd.s32 %s41, 1
    %s43 = scalar_select %p40, %s41, %s42
    %p46 = pneg %p40
    %p47 = scmp.eq.s32.totalorder %s10, 3
    %p48 = por %p46, %p47
    %p49 = scmp.ne.s32.totalorder %s41, %s44
    %p50 = scmp.eq.s32.totalorder %s10, 0
    %p51 = por %p49, %p50
    %p52 = scmp.ne.s32.totalorder %s41, %s44
    %p53 = scmp.eq.s32.totalorder %s15, 3
    %p54 = por %p52, %p53
    %p55 = scmp.ne.s32.totalorder %s44, %s45
    %p56 = scmp.eq.s32.totalorder %s15, 0
    %p57 = por %p55, %p56
    %p58 = scmp.ne.s32.totalorder %s44, %s45
    %p59 = scmp.eq.s32.totalorder %s16, 3
    %p60 = por %p58, %p59
    %p62 = scmp.ne.s32.totalorder %s45, %s61
    %p63 = scmp.eq.s32.totalorder %s16, 0
    %p64 = por %p62, %p63
    %s66 = sadd.s32 %s65, 1
    %p69 = scmp.eq.s32.totalorder %s10, 3
    %p70 = scmp.ne.s32.totalorder %s65, %s67
    %p71 = scmp.eq.s32.totalorder %s10, 0
    %p72 = por %p70, %p71
    %p73 = scmp.ne.s32.totalorder %s65, %s67
    %p74 = scmp.eq.s32.totalorder %s15, 3
    %p75 = por %p73, %p74
    %p76 = scmp.ne.s32.totalorder %s67, %s68
    %p77 = scmp.eq.s32.totalorder %s15, 0
    %p78 = por %p76, %p77
    %p79 = scmp.ne.s32.totalorder %s67, %s68
    %p80 = scmp.eq.s32.totalorder %s16, 3
    %p81 = por %p79, %p80
    %p83 = scmp.ne.s32.totalorder %s68, %s82
    %p84 = scmp.eq.s32.totalorder %s16, 0
    %p85 = por %p83, %p84
    %s87 = sadd.s32 %s86, 1
    %p90 = scmp.eq.s32.totalorder %s10, 3
    %p91 = scmp.ne.s32.totalorder %s86, %s88
    %p92 = scmp.eq.s32.totalorder %s10, 0
    %p93 = por %p91, %p92
    %p94 = scmp.ne.s32.totalorder %s86, %s88
    %p95 = scmp.eq.s32.totalorder %s15, 3
    %p96 = por %p94, %p95
    %p97 = scmp.ne.s32.totalorder %s88, %s89
    %p98 = scmp.eq.s32.totalorder %s15, 0
    %p99 = por %p97, %p98
    %p100 = scmp.ne.s32.totalorder %s88, %s89
    %p101 = scmp.eq.s32.totalorder %s16, 3
    %p102 = por %p100, %p101
    %p104 = scmp.ne.s32.totalorder %s89, %s103
    %p105 = scmp.eq.s32.totalorder %s16, 0
    %p106 = por %p104, %p105
    %s108 = sadd.s32 %s107, 1
    %p111 = scmp.eq.s32.totalorder %s10, 3
    %p112 = scmp.ne.s32.totalorder %s107, %s109
    %p113 = scmp.eq.s32.totalorder %s10, 0
    %p114 = por %p112, %p113
    %p115 = scmp.ne.s32.totalorder %s107, %s109
    %p116 = scmp.eq.s32.totalorder %s15, 3
    %p117 = por %p115, %p116
    %p118 = scmp.ne.s32.totalorder %s109, %s110
    %p119 = scmp.eq.s32.totalorder %s15, 0
    %p120 = por %p118, %p119
    %p121 = scmp.ne.s32.totalorder %s109, %s110
    %p122 = scmp.eq.s32.totalorder %s16, 3
    %p123 = por %p121, %p122
    %p125 = scmp.ne.s32.totalorder %s110, %s124
    %p126 = scmp.eq.s32.totalorder %s16, 0
    %p127 = por %p125, %p126
    %s129 = sadd.s32 %s128, 1
    %p132 = scmp.eq.s32.totalorder %s10, 3
    %p133 = scmp.ne.s32.totalorder %s128, %s130
    %p134 = scmp.eq.s32.totalorder %s10, 0
    %p135 = por %p133, %p134
    %p136 = scmp.ne.s32.totalorder %s128, %s130
    %p137 = scmp.eq.s32.totalorder %s15, 3
    %p138 = por %p136, %p137
    %p139 = scmp.ne.s32.totalorder %s130, %s131
    %p140 = scmp.eq.s32.totalorder %s15, 0
    %p141 = por %p139, %p140
    %p142 = scmp.ne.s32.totalorder %s130, %s131
    %p143 = scmp.eq.s32.totalorder %s16, 3
    %p144 = por %p142, %p143
    %p146 = scmp.ne.s32.totalorder %s131, %s145
    %p147 = scmp.eq.s32.totalorder %s16, 0
    %p148 = por %p146, %p147
    %p149 = scmp.le.s32.totalorder 1, %s10
    %p150 = scmp.lt.s32.totalorder %s10, 5
    %p151 = pnand %p149, %p150
    %p152 = pneg %p151
    // Predicated region
    $region9: #{tpu_custom_call.1} parent=5 // pred_check
      _
    $region10: #{tpu_custom_call.1} parent=5 // pred_check_branch
      %154 = sbr.rel (%p151) target = $region12
    $region11: #{tpu_custom_call.1} parent=5 // pred_region
      %s155 = ssub.s32 %s10, 1
      // Predicated region
      $region13: #{tpu_custom_call.1} parent=11 // pred_check
        %p156 = pneg %p78
      $region14: #{tpu_custom_call.1} parent=11 // pred_check_branch
        %158 = sbr.rel (%p156) target = $region16
      $region15: #{tpu_custom_call.1} parent=11 // pred_region
        _
      $region16: #{tpu_custom_call.1} parent=11 // pred_fallthru
        _
      // Predicated region
      $region17: #{tpu_custom_call.1} parent=11 // pred_check
        %p159 = pneg %p99
      $region18: #{tpu_custom_call.1} parent=11 // pred_check_branch
        %161 = sbr.rel (%p159) target = $region20
      $region19: #{tpu_custom_call.1} parent=11 // pred_region
        _
      $region20: #{tpu_custom_call.1} parent=11 // pred_fallthru
        _
      // Predicated region
      $region21: #{tpu_custom_call.1} parent=11 // pred_check
        %p162 = pneg %p120
      $region22: #{tpu_custom_call.1} parent=11 // pred_check_branch
        %164 = sbr.rel (%p162) target = $region24
      $region23: #{tpu_custom_call.1} parent=11 // pred_region
        _
      $region24: #{tpu_custom_call.1} parent=11 // pred_fallthru
        _
    $region12: #{tpu_custom_call.1} parent=5 // pred_fallthru
      _
    %p165 = scmp.lt.s32.totalorder %s10, 4
    // Predicated region
    $region25: #{tpu_custom_call.1} parent=5 // pred_check
      %p166 = pneg %p165
    $region26: #{tpu_custom_call.1} parent=5 // pred_check_branch
      %168 = sbr.rel (%p166) target = $region28
    $region27: #{tpu_custom_call.1} parent=5 // pred_region
      // Predicated region
      $region29: #{tpu_custom_call.1} parent=27 // pred_check
        %p169 = pneg %p51
      $region30: #{tpu_custom_call.1} parent=27 // pred_check_branch
        %171 = sbr.rel (%p169) target = $region32
      $region31: #{tpu_custom_call.1} parent=27 // pred_region
        %s172 = smul.u32 2, %s19
        %p173 = scmp.lt.s32.totalorder %s18, 1
        %s174 = scalar_select %p173, %s18, 1
        %p175 = scmp.lt.s32.totalorder %s172, 1
        %s176 = scalar_select %p175, %s172, 1
        %s177 = smul.addr %s174, 2
        %s178 = sadd.s32 %s176, %s177
        %s179 = smul.addr %s178, 4
        %s180 = scalar_lea.vmem %s0, %s179
        %s181 = smul.u32 2, %s19
      $region32: #{tpu_custom_call.1} parent=27 // pred_fallthru
        _
    $region28: #{tpu_custom_call.1} parent=5 // pred_fallthru
      _
    %p182 = scmp.le.s32.totalorder 1, %s10
    %p183 = scmp.lt.s32.totalorder %s10, 5
    %p184 = pnand %p182, %p183
    %p185 = pneg %p184
    // Predicated region
    $region33: #{tpu_custom_call.1} parent=5 // pred_check
      _
    $region34: #{tpu_custom_call.1} parent=5 // pred_check_branch
      %187 = sbr.rel (%p184) target = $region36
    $region35: #{tpu_custom_call.1} parent=5 // pred_region
      %s188 = ssub.s32 %s10, 1
      %s189 = smul.u32 2, %s22
      %p190 = scmp.lt.s32.totalorder %s21, 1
      %s191 = scalar_select %p190, %s21, 1
      %p192 = scmp.lt.s32.totalorder %s189, 1
      %s193 = scalar_select %p192, %s189, 1
      %s194 = smul.addr %s191, 2
      %s195 = sadd.s32 %s193, %s194
      %s196 = smul.addr %s195, 4
      %s197 = scalar_lea.vmem %s0, %s196
      %p198 = pneg %p57
      %p199 = pneg %p54
      %p200 = pneg %p78
      %p201 = pneg %p75
      %p202 = pneg %p99
      %p203 = pneg %p96
      %p204 = pneg %p120
      %p205 = pneg %p117
      %p206 = pneg %p141
      %p207 = pneg %p138
      %s208 = smul.u32 2, %s22
      %p209 = scmp.lt.s32.totalorder %s21, 1
      %s210 = scalar_select %p209, %s21, 1
      %p211 = scmp.lt.s32.totalorder %s208, 1
      %s212 = scalar_select %p211, %s208, 1
      %s213 = smul.addr %s210, 2
      %s214 = sadd.s32 %s212, %s213
      %s215 = smul.addr %s214, 4
      %s216 = scalar_lea.vmem %s0, %s215
      %s217 = smul.u32 2, %s22
      %p218 = scmp.eq.s32.totalorder %s20, 0
      %p219 = scmp.eq.s32.totalorder %s21, 0
      %p220 = pnand %p218, %p219
      %p221 = pneg %p220
      %p222 = scmp.eq.s32.totalorder %s22, 0
      %p223 = pnand %p221, %p222
      %p224 = pneg %p223
      // Predicated region
      $region37: #{tpu_custom_call.1} parent=35 // pred_check
        _
      $region38: #{tpu_custom_call.1} parent=35 // pred_check_branch
        %226 = sbr.rel (%p223) target = $region40
      $region39: #{tpu_custom_call.1} parent=35 // pred_region
        %vm227 = vcmask 7168
        %228 = vst.msk [vmem:[%s4] sm:$0xff] %vm227, 0.0
        %229 = vst.msk [vmem:[%s4 + $0x8] sm:$0xff] %vm227, 0.0
        %230 = vst.msk [vmem:[%s4 + $0x10] sm:$0xff] %vm227, 0.0
        %231 = vst.msk [vmem:[%s4 + $0x18] sm:$0xff] %vm227, 0.0
        %232 = vst.msk [vmem:[%s4 + $0x20] sm:$0xff] %vm227, 0.0
        %233 = vst.msk [vmem:[%s4 + $0x28] sm:$0xff] %vm227, 0.0
        %234 = vst.msk [vmem:[%s4 + $0x30] sm:$0xff] %vm227, 0.0
        %235 = vst.msk [vmem:[%s4 + $0x38] sm:$0xff] %vm227, 0.0
        %236 = vst.msk [vmem:[%s4 + $0x40] sm:$0xff] %vm227, 0.0
        %237 = vst.msk [vmem:[%s4 + $0x48] sm:$0xff] %vm227, 0.0
        %238 = vst.msk [vmem:[%s4 + $0x50] sm:$0xff] %vm227, 0.0
        %239 = vst.msk [vmem:[%s4 + $0x58] sm:$0xff] %vm227, 0.0
        %240 = vst.msk [vmem:[%s4 + $0x60] sm:$0xff] %vm227, 0.0
        %241 = vst.msk [vmem:[%s4 + $0x68] sm:$0xff] %vm227, 0.0
        %242 = vst.msk [vmem:[%s4 + $0x70] sm:$0xff] %vm227, 0.0
        %243 = vst.msk [vmem:[%s4 + $0x78] sm:$0xff] %vm227, 0.0
      $region40: #{tpu_custom_call.1} parent=35 // pred_fallthru
        _
      %v244 = vld [vmem:[%s216] sm:$0xff]
      %v245 = vld [vmem:[%s3] sm:$0xff]
      %v246 = vld [vmem:[%s3 + $0x8] sm:$0xff]
      %v247 = vld [vmem:[%s3 + $0x10] sm:$0xff]
      %v248 = vld [vmem:[%s3 + $0x18] sm:$0xff]
      %s249 = scalar_lea.vmem %s3, 32
      %v250 = vld [vmem:[%s249] sm:$0xff]
      %v251 = vld [vmem:[%s249 + $0x8] sm:$0xff]
      %v252 = vld [vmem:[%s249 + $0x10] sm:$0xff]
      %v253 = vld [vmem:[%s249 + $0x18] sm:$0xff]
      %s254 = scalar_lea.vmem %s3, 64
      %v255 = vld [vmem:[%s254] sm:$0xff]
      %v256 = vld [vmem:[%s254 + $0x8] sm:$0xff]
      %v257 = vld [vmem:[%s254 + $0x10] sm:$0xff]
      %v258 = vld [vmem:[%s254 + $0x18] sm:$0xff]
      %s259 = scalar_lea.vmem %s3, 96
      %v260 = vld [vmem:[%s259] sm:$0xff]
      %v261 = vld [vmem:[%s259 + $0x8] sm:$0xff]
      %v262 = vld [vmem:[%s259 + $0x10] sm:$0xff]
      %v263 = vld [vmem:[%s259 + $0x18] sm:$0xff]
      // Predicated region
      $region41: #{tpu_custom_call.1} parent=35 // pred_check
        %p264 = pneg %p218
      $region42: #{tpu_custom_call.1} parent=35 // pred_check_branch
        %266 = sbr.rel (%p264) target = $region44
      $region43: #{tpu_custom_call.1} parent=35 // pred_region
        %v267 = vld [vmem:[%s1] sm:$0xff]
        %v268 = vld [vmem:[%s1 + $0x8] sm:$0xff]
        %v269 = vld [vmem:[%s1 + $0x10] sm:$0xff]
        %v270 = vld [vmem:[%s1 + $0x18] sm:$0xff]
        %272 = vset.pattern.permute.xlu0 0
        %273 = vperm.xlu0 %272, %v245
        %v274 = vpop.permute.xlu0 %273
        %277 = vset.pattern.permute.xlu0 0
        %278 = vperm.xlu0 %277, %v246
        %v279 = vpop.permute.xlu0 %278
        %282 = vset.pattern.permute.xlu0 0
        %283 = vperm.xlu0 %282, %v247
        %v284 = vpop.permute.xlu0 %283
        %287 = vset.pattern.permute.xlu0 0
        %288 = vperm.xlu0 %287, %v248
        %v289 = vpop.permute.xlu0 %288
        %v292 = vcombine.high %v244, %v244
        %vm293 = vcmask 31744
        %v295 = vsel %vm293, %v267, 0
        %v298 = vsel %vm293, %v268, 0
        %v301 = vsel %vm293, %v269, 0
        %v304 = vsel %vm293, %v270, 0
        %vm306 = vcmask 1043456
        %v307 = vsel %vm306, %v244, 0
        %v309 = vsel %vm306, %v292, 0
        %311 = vmatprep.subr.mxu0 %v309
        %312 = vmatpush1.msra.mxu0 %v307
        %313 = vmatprep.subr.mxu0 0.0
        %314 = vmatpush1.msra.mxu0 0.0
        %315 = vmatprep.subr.mxu0 0.0
        %316 = vmatpush1.msra.mxu0 0.0
        %317 = vmatprep.subr.mxu0 0.0
        %318 = vmatpush1.msra.mxu0 0.0
        %319 = vmatprep.subr.mxu0 0.0
        %320 = vmatpush1.msra.mxu0 0.0
        %321 = vmatprep.subr.mxu0 0.0
        %322 = vmatpush1.msra.mxu0 0.0
        %323 = vmatprep.subr.mxu0 0.0
        %324 = vmatpush1.msra.mxu0 0.0
        %325 = vmatprep.subr.mxu0 0.0
        %326 = vmatpush1.msra.mxu0 0.0
        %327 = vmatprep.subr.mxu0 0.0
        %328 = vmatpush1.msra.mxu0 0.0
        %329 = vmatprep.subr.mxu0 0.0
        %330 = vmatpush1.msra.mxu0 0.0
        %331 = vmatprep.subr.mxu0 0.0
        %332 = vmatpush1.msra.mxu0 0.0
        %333 = vmatprep.subr.mxu0 0.0
        %334 = vmatpush1.msra.mxu0 0.0
        %335 = vmatprep.subr.mxu0 0.0
        %336 = vmatpush1.msra.mxu0 0.0
        %337 = vmatprep.subr.mxu0 0.0
        %338 = vmatpush1.msra.mxu0 0.0
        %339 = vmatprep.subr.mxu0 0.0
        %340 = vmatpush1.msra.mxu0 0.0
        %341 = vmatprep.subr.mxu0 0.0
        %342 = vmatpush1.msra.mxu0 0.0
        %343 = vmatprep.subr.mxu0 0.0
        %344 = vmatpush1.msra.mxu0 0.0
        %345 = vmatprep.subr.mxu0 0.0
        %346 = vmatpush1.msra.mxu0 0.0
        %347 = vmatprep.subr.mxu0 0.0
        %348 = vmatpush1.msra.mxu0 0.0
        %349 = vmatprep.subr.mxu0 0.0
        %350 = vmatpush1.msra.mxu0 0.0
        %351 = vmatprep.subr.mxu0 0.0
        %352 = vmatpush1.msra.mxu0 0.0
        %353 = vmatprep.subr.mxu0 0.0
        %354 = vmatpush1.msra.mxu0 0.0
        %355 = vmatprep.subr.mxu0 0.0
        %356 = vmatpush1.msra.mxu0 0.0
        %357 = vmatprep.subr.mxu0 0.0
        %358 = vmatpush1.msra.mxu0 0.0
        %359 = vmatprep.subr.mxu0 0.0
        %360 = vmatpush1.msra.mxu0 0.0
        %361 = vmatprep.subr.mxu0 0.0
        %362 = vmatpush1.msra.mxu0 0.0
        %363 = vmatprep.subr.mxu0 0.0
        %364 = vmatpush1.msra.mxu0 0.0
        %365 = vmatprep.subr.mxu0 0.0
        %366 = vmatpush1.msra.mxu0 0.0
        %367 = vmatprep.subr.mxu0 0.0
        %368 = vmatpush1.msra.mxu0 0.0
        %369 = vmatprep.subr.mxu0 0.0
        %370 = vmatpush1.msra.mxu0 0.0
        %371 = vmatprep.subr.mxu0 0.0
        %372 = vmatpush1.msra.mxu0 0.0
        %373 = vmatprep.subr.mxu0 0.0
        %374 = vmatpush1.msra.mxu0 0.0
        %375 = vmatprep.mubr.f32.mxu0 0.0
        %376 = vmatmul.mubr.f32.gmra.mrb[0].mxu0 %v295
        %v377 = vpop.f32.mrb[0].mxu0
        %v378 = vadd.f32 %v274, %v377
        %v379 = vpop.f32.mrb[0].mxu0
        %v380 = vadd.f32 %v274, %v379
        %381 = vmatprep.mubr.f32.mxu0 0.0
        %382 = vmatmul.mubr.f32.gmra.mrb[0].mxu0 %v298
        %v383 = vpop.f32.mrb[0].mxu0
        %v384 = vadd.f32 %v279, %v383
        %v385 = vpop.f32.mrb[0].mxu0
        %v386 = vadd.f32 %v279, %v385
        %387 = vmatprep.mubr.f32.mxu0 0.0
        %388 = vmatmul.mubr.f32.gmra.mrb[0].mxu0 %v301
        %v389 = vpop.f32.mrb[0].mxu0
        %v390 = vadd.f32 %v284, %v389
        %v391 = vpop.f32.mrb[0].mxu0
        %v392 = vadd.f32 %v284, %v391
        %393 = vmatprep.mubr.f32.mxu0 0.0
        %394 = vmatmul.mubr.f32.gmra.mrb[0].mxu0 %v304
        %v395 = vpop.f32.mrb[0].mxu0
        %v396 = vadd.f32 %v289, %v395
        %v397 = vpop.f32.mrb[0].mxu0
        %v398 = vadd.f32 %v289, %v397
        %399 = vdwg.mxu0
        %v400 = vld [vmem:[%s4] sm:$0xff]
        %v401 = vld [vmem:[%s4 + $0x8] sm:$0xff]
        %v402 = vld [vmem:[%s4 + $0x10] sm:$0xff]
        %v403 = vld [vmem:[%s4 + $0x18] sm:$0xff]
        %v404 = vadd.f32 %v378, %v380
        %405 = vadd.xlane.f32.xlu0 %v404
        %v406 = vpop.xlane.xlu0 %405
        %v407 = vadd.f32 %v384, %v386
        %408 = vadd.xlane.f32.xlu0 %v407
        %v409 = vpop.xlane.xlu0 %408
        %v410 = vadd.f32 %v390, %v392
        %411 = vadd.xlane.f32.xlu0 %v410
        %v412 = vpop.xlane.xlu0 %411
        %v413 = vadd.f32 %v396, %v398
        %414 = vadd.xlane.f32.xlu0 %v413
        %v415 = vpop.xlane.xlu0 %414
        %v416 = vadd.f32 %v400, %v406
        %v417 = vadd.f32 %v401, %v409
        %v418 = vadd.f32 %v402, %v412
        %v419 = vadd.f32 %v403, %v415
        %vm420 = vcmask 7168
        %421 = vst.msk [vmem:[%s4] sm:$0xff] %vm420, %v416
        %422 = vst.msk [vmem:[%s4 + $0x8] sm:$0xff] %vm420, %v417
        %423 = vst.msk [vmem:[%s4 + $0x10] sm:$0xff] %vm420, %v418
        %424 = vst.msk [vmem:[%s4 + $0x18] sm:$0xff] %vm420, %v419
        %s425 = scalar_lea.vmem %s4, 32
        %v426 = vld [vmem:[%s425] sm:$0xff]
        %v427 = vld [vmem:[%s425 + $0x8] sm:$0xff]
        %v428 = vld [vmem:[%s425 + $0x10] sm:$0xff]
        %v429 = vld [vmem:[%s425 + $0x18] sm:$0xff]
        %v430 = vmul.f32 %v378, %v378
        %v431 = vmul.f32 %v380, %v380
        %v432 = vmul.f32 %v384, %v384
        %v433 = vmul.f32 %v386, %v386
        %v434 = vmul.f32 %v390, %v390
        %v435 = vmul.f32 %v392, %v392
        %v436 = vmul.f32 %v396, %v396
        %v437 = vmul.f32 %v398, %v398
        %v438 = vadd.f32 %v430, %v431
        %439 = vadd.xlane.f32.xlu0 %v438
        %v440 = vpop.xlane.xlu0 %439
        %v441 = vadd.f32 %v432, %v433
        %442 = vadd.xlane.f32.xlu0 %v441
        %v443 = vpop.xlane.xlu0 %442
        %v444 = vadd.f32 %v434, %v435
        %445 = vadd.xlane.f32.xlu0 %v444
        %v446 = vpop.xlane.xlu0 %445
        %v447 = vadd.f32 %v436, %v437
        %448 = vadd.xlane.f32.xlu0 %v447
        %v449 = vpop.xlane.xlu0 %448
        %v450 = vadd.f32 %v426, %v440
        %v451 = vadd.f32 %v427, %v443
        %v452 = vadd.f32 %v428, %v446
        %v453 = vadd.f32 %v429, %v449
        %454 = vst.msk [vmem:[%s425] sm:$0xff] %vm420, %v450
        %455 = vst.msk [vmem:[%s425 + $0x8] sm:$0xff] %vm420, %v451
        %456 = vst.msk [vmem:[%s425 + $0x10] sm:$0xff] %vm420, %v452
        %457 = vst.msk [vmem:[%s425 + $0x18] sm:$0xff] %vm420, %v453
      $region44: #{tpu_custom_call.1} parent=35 // pred_fallthru
        _
      %p458 = scmp.eq.s32.totalorder %s20, 1
      // Predicated region
      $region45: #{tpu_custom_call.1} parent=35 // pred_check
        %p459 = pneg %p458
      $region46: #{tpu_custom_call.1} parent=35 // pred_check_branch
        %461 = sbr.rel (%p459) target = $region48
      $region47: #{tpu_custom_call.1} parent=35 // pred_region
        %v462 = vld [vmem:[%s4] sm:$0xff]
        %v463 = vld [vmem:[%s4 + $0x8] sm:$0xff]
        %v464 = vld [vmem:[%s4 + $0x10] sm:$0xff]
        %v465 = vld [vmem:[%s4 + $0x18] sm:$0xff]
        %v466 = vmul.f32 %v462, 0.001953125
        %v467 = vmul.f32 %v463, 0.001953125
        %v468 = vmul.f32 %v464, 0.001953125
        %v469 = vmul.f32 %v465, 0.001953125
        %s470 = scalar_lea.vmem %s4, 32
        %v471 = vld [vmem:[%s470] sm:$0xff]
        %v472 = vld [vmem:[%s470 + $0x8] sm:$0xff]
        %v473 = vld [vmem:[%s470 + $0x10] sm:$0xff]
        %v474 = vld [vmem:[%s470 + $0x18] sm:$0xff]
        %v475 = vmul.f32 %v471, 0.001953125
        %v476 = vmul.f32 %v472, 0.001953125
        %v477 = vmul.f32 %v473, 0.001953125
        %v478 = vmul.f32 %v474, 0.001953125
        %v479 = vmul.f32 %v466, %v466
        %v480 = vmul.f32 %v467, %v467
        %v481 = vmul.f32 %v468, %v468
        %v482 = vmul.f32 %v469, %v469
        %v483 = vsub.f32 %v475, %v479
        %v484 = vsub.f32 %v476, %v480
        %v485 = vsub.f32 %v477, %v481
        %v486 = vsub.f32 %v478, %v482
        %v487 = vmax.f32 %v483, 0.0
        %v488 = vmax.f32 %v484, 0.0
        %v489 = vmax.f32 %v485, 0.0
        %v490 = vmax.f32 %v486, 0.0
        %v491 = vadd.f32 %v487, 1e-05
        %v492 = vadd.f32 %v488, 1e-05
        %v493 = vadd.f32 %v489, 1e-05
        %v494 = vadd.f32 %v490, 1e-05
        %v495 = vrsqrt.pop %v491
        %v496 = vrsqrt.pop %v492
        %v497 = vrsqrt.pop %v493
        %v498 = vrsqrt.pop %v494
        %v499 = vmul.f32 %v250, %v495
        %v500 = vmul.f32 %v251, %v496
        %v501 = vmul.f32 %v252, %v497
        %v502 = vmul.f32 %v253, %v498
        %v503 = vmul.f32 %v466, %v499
        %v504 = vmul.f32 %v467, %v500
        %v505 = vmul.f32 %v468, %v501
        %v506 = vmul.f32 %v469, %v502
        %v507 = vsub.f32 %v255, %v503
        %v508 = vsub.f32 %v256, %v504
        %v509 = vsub.f32 %v257, %v505
        %v510 = vsub.f32 %v258, %v506
        %v511 = vld [vmem:[%s1] sm:$0xff]
        %v512 = vld [vmem:[%s1 + $0x8] sm:$0xff]
        %v513 = vld [vmem:[%s1 + $0x10] sm:$0xff]
        %v514 = vld [vmem:[%s1 + $0x18] sm:$0xff]
        %516 = vset.pattern.permute.xlu0 0
        %517 = vperm.xlu0 %516, %v499
        %v518 = vpop.permute.xlu0 %517
        %521 = vset.pattern.permute.xlu0 0
        %522 = vperm.xlu0 %521, %v500
        %v523 = vpop.permute.xlu0 %522
        %526 = vset.pattern.permute.xlu0 0
        %527 = vperm.xlu0 %526, %v501
        %v528 = vpop.permute.xlu0 %527
        %531 = vset.pattern.permute.xlu0 0
        %532 = vperm.xlu0 %531, %v502
        %v533 = vpop.permute.xlu0 %532
        %v535 = vmul.f32 %v518, %v511
        %v536 = vmul.f32 %v523, %v512
        %v537 = vmul.f32 %v528, %v513
        %v538 = vmul.f32 %v533, %v514
        %v539 = vmul.f32 %v499, %v245
        %v540 = vmul.f32 %v500, %v246
        %v541 = vmul.f32 %v501, %v247
        %v542 = vmul.f32 %v502, %v248
        %v543 = vadd.f32 %v539, %v507
        %v544 = vadd.f32 %v540, %v508
        %v545 = vadd.f32 %v541, %v509
        %v546 = vadd.f32 %v542, %v510
        %548 = vset.pattern.permute.xlu0 0
        %549 = vperm.xlu0 %548, %v543
        %v550 = vpop.permute.xlu0 %549
        %553 = vset.pattern.permute.xlu0 0
        %554 = vperm.xlu0 %553, %v544
        %v555 = vpop.permute.xlu0 %554
        %558 = vset.pattern.permute.xlu0 0
        %559 = vperm.xlu0 %558, %v545
        %v560 = vpop.permute.xlu0 %559
        %563 = vset.pattern.permute.xlu0 0
        %564 = vperm.xlu0 %563, %v546
        %v565 = vpop.permute.xlu0 %564
        %v568 = vcombine.high %v244, %v244
        %vm569 = vcmask 31744
        %v571 = vsel %vm569, %v535, 0
        %v574 = vsel %vm569, %v536, 0
        %v577 = vsel %vm569, %v537, 0
        %v580 = vsel %vm569, %v538, 0
        %vm582 = vcmask 1043456
        %v583 = vsel %vm582, %v244, 0
        %v585 = vsel %vm582, %v568, 0
        %587 = vmatprep.subr.mxu0 %v585
        %588 = vmatpush1.msra.mxu0 %v583
        %589 = vmatprep.subr.mxu0 0.0
        %590 = vmatpush1.msra.mxu0 0.0
        %591 = vmatprep.subr.mxu0 0.0
        %592 = vmatpush1.msra.mxu0 0.0
        %593 = vmatprep.subr.mxu0 0.0
        %594 = vmatpush1.msra.mxu0 0.0
        %595 = vmatprep.subr.mxu0 0.0
        %596 = vmatpush1.msra.mxu0 0.0
        %597 = vmatprep.subr.mxu0 0.0
        %598 = vmatpush1.msra.mxu0 0.0
        %599 = vmatprep.subr.mxu0 0.0
        %600 = vmatpush1.msra.mxu0 0.0
        %601 = vmatprep.subr.mxu0 0.0
        %602 = vmatpush1.msra.mxu0 0.0
        %603 = vmatprep.subr.mxu0 0.0
        %604 = vmatpush1.msra.mxu0 0.0
        %605 = vmatprep.subr.mxu0 0.0
        %606 = vmatpush1.msra.mxu0 0.0
        %607 = vmatprep.subr.mxu0 0.0
        %608 = vmatpush1.msra.mxu0 0.0
        %609 = vmatprep.subr.mxu0 0.0
        %610 = vmatpush1.msra.mxu0 0.0
        %611 = vmatprep.subr.mxu0 0.0
        %612 = vmatpush1.msra.mxu0 0.0
        %613 = vmatprep.subr.mxu0 0.0
        %614 = vmatpush1.msra.mxu0 0.0
        %615 = vmatprep.subr.mxu0 0.0
        %616 = vmatpush1.msra.mxu0 0.0
        %617 = vmatprep.subr.mxu0 0.0
        %618 = vmatpush1.msra.mxu0 0.0
        %619 = vmatprep.subr.mxu0 0.0
        %620 = vmatpush1.msra.mxu0 0.0
        %621 = vmatprep.subr.mxu0 0.0
        %622 = vmatpush1.msra.mxu0 0.0
        %623 = vmatprep.subr.mxu0 0.0
        %624 = vmatpush1.msra.mxu0 0.0
        %625 = vmatprep.subr.mxu0 0.0
        %626 = vmatpush1.msra.mxu0 0.0
        %627 = vmatprep.subr.mxu0 0.0
        %628 = vmatpush1.msra.mxu0 0.0
        %629 = vmatprep.subr.mxu0 0.0
        %630 = vmatpush1.msra.mxu0 0.0
        %631 = vmatprep.subr.mxu0 0.0
        %632 = vmatpush1.msra.mxu0 0.0
        %633 = vmatprep.subr.mxu0 0.0
        %634 = vmatpush1.msra.mxu0 0.0
        %635 = vmatprep.subr.mxu0 0.0
        %636 = vmatpush1.msra.mxu0 0.0
        %637 = vmatprep.subr.mxu0 0.0
        %638 = vmatpush1.msra.mxu0 0.0
        %639 = vmatprep.subr.mxu0 0.0
        %640 = vmatpush1.msra.mxu0 0.0
        %641 = vmatprep.subr.mxu0 0.0
        %642 = vmatpush1.msra.mxu0 0.0
        %643 = vmatprep.subr.mxu0 0.0
        %644 = vmatpush1.msra.mxu0 0.0
        %645 = vmatprep.subr.mxu0 0.0
        %646 = vmatpush1.msra.mxu0 0.0
        %647 = vmatprep.subr.mxu0 0.0
        %648 = vmatpush1.msra.mxu0 0.0
        %649 = vmatprep.subr.mxu0 0.0
        %650 = vmatpush1.msra.mxu0 0.0
        %651 = vmatprep.mubr.f32.mxu0 0.0
        %652 = vmatmul.mubr.f32.gmra.mrb[0].mxu0 %v571
        %v653 = vpop.f32.mrb[0].mxu0
        %v654 = vadd.f32 %v550, %v653
        %v655 = vpop.f32.mrb[0].mxu0
        %v656 = vadd.f32 %v550, %v655
        %657 = vmatprep.mubr.f32.mxu0 0.0
        %658 = vmatmul.mubr.f32.gmra.mrb[0].mxu0 %v574
        %v659 = vpop.f32.mrb[0].mxu0
        %v660 = vadd.f32 %v555, %v659
        %v661 = vpop.f32.mrb[0].mxu0
        %v662 = vadd.f32 %v555, %v661
        %663 = vmatprep.mubr.f32.mxu0 0.0
        %664 = vmatmul.mubr.f32.gmra.mrb[0].mxu0 %v577
        %v665 = vpop.f32.mrb[0].mxu0
        %v666 = vadd.f32 %v560, %v665
        %v667 = vpop.f32.mrb[0].mxu0
        %v668 = vadd.f32 %v560, %v667
        %669 = vmatprep.mubr.f32.mxu0 0.0
        %670 = vmatmul.mubr.f32.gmra.mrb[0].mxu0 %v580
        %v671 = vpop.f32.mrb[0].mxu0
        %v672 = vadd.f32 %v565, %v671
        %v673 = vpop.f32.mrb[0].mxu0
        %v674 = vadd.f32 %v565, %v673
        %675 = vdwg.mxu0
        %v676 = vmul.f32 %v654, 0.5
        %v677 = vmul.f32 %v656, 0.5
        %v678 = vmul.f32 %v660, 0.5
        %v679 = vmul.f32 %v662, 0.5
        %v680 = vmul.f32 %v666, 0.5
        %v681 = vmul.f32 %v668, 0.5
        %v682 = vmul.f32 %v672, 0.5
        %v683 = vmul.f32 %v674, 0.5
        %v684 = vmul.f32 %v654, 0.70710677
        %v685 = vmul.f32 %v656, 0.70710677
        %v686 = vmul.f32 %v660, 0.70710677
        %v687 = vmul.f32 %v662, 0.70710677
        %v688 = vmul.f32 %v666, 0.70710677
        %v689 = vmul.f32 %v668, 0.70710677
        %v690 = vmul.f32 %v672, 0.70710677
        %v691 = vmul.f32 %v674, 0.70710677
        %v692 = verf.f32.pop %v684
        %v693 = verf.f32.pop %v685
        %v694 = verf.f32.pop %v686
        %v695 = verf.f32.pop %v687
        %v696 = verf.f32.pop %v688
        %v697 = verf.f32.pop %v689
        %v698 = verf.f32.pop %v690
        %v699 = verf.f32.pop %v691
        %v700 = vadd.f32 %v692, 1.0
        %v701 = vadd.f32 %v693, 1.0
        %v702 = vadd.f32 %v694, 1.0
        %v703 = vadd.f32 %v695, 1.0
        %v704 = vadd.f32 %v696, 1.0
        %v705 = vadd.f32 %v697, 1.0
        %v706 = vadd.f32 %v698, 1.0
        %v707 = vadd.f32 %v699, 1.0
        %v708 = vmul.f32 %v676, %v700
        %v709 = vmul.f32 %v677, %v701
        %v710 = vmul.f32 %v678, %v702
        %v711 = vmul.f32 %v679, %v703
        %v712 = vmul.f32 %v680, %v704
        %v713 = vmul.f32 %v681, %v705
        %v714 = vmul.f32 %v682, %v706
        %v715 = vmul.f32 %v683, %v707
        %v716 = vld [vmem:[%s2] sm:$0xff]
        %v717 = vld [vmem:[%s2 + $0x8] sm:$0xff]
        %v718 = vld [vmem:[%s2 + $0x10] sm:$0xff]
        %v719 = vld [vmem:[%s2 + $0x18] sm:$0xff]
        %721 = vset.pattern.permute.xlu0 0
        %722 = vperm.xlu0 %721, %v260
        %v723 = vpop.permute.xlu0 %722
        %726 = vset.pattern.permute.xlu0 0
        %727 = vperm.xlu0 %726, %v261
        %v728 = vpop.permute.xlu0 %727
        %731 = vset.pattern.permute.xlu0 0
        %732 = vperm.xlu0 %731, %v262
        %v733 = vpop.permute.xlu0 %732
        %736 = vset.pattern.permute.xlu0 0
        %737 = vperm.xlu0 %736, %v263
        %v738 = vpop.permute.xlu0 %737
        %vm740 = vcmask 261120
        %v742 = vsel %vm740, %v716, 0
        %v745 = vsel %vm740, %v717, 0
        %v748 = vsel %vm740, %v718, 0
        %v751 = vsel %vm740, %v719, 0
        %753 = vmatprep.subr.mxu0 %v709
        %754 = vmatpush1.msra.mxu0 %v708
        %755 = vmatprep.subr.mxu0 %v711
        %756 = vmatpush1.msra.mxu0 %v710
        %757 = vmatprep.subr.mxu0 %v713
        %758 = vmatpush1.msra.mxu0 %v712
        %759 = vmatprep.subr.mxu0 %v715
        %760 = vmatpush1.msra.mxu0 %v714
        %761 = vmatprep.subr.mxu0 0.0
        %762 = vmatpush1.msra.mxu0 0.0
        %763 = vmatprep.subr.mxu0 0.0
        %764 = vmatpush1.msra.mxu0 0.0
        %765 = vmatprep.subr.mxu0 0.0
        %766 = vmatpush1.msra.mxu0 0.0
        %767 = vmatprep.subr.mxu0 0.0
        %768 = vmatpush1.msra.mxu0 0.0
        %769 = vmatprep.subr.mxu0 0.0
        %770 = vmatpush1.msra.mxu0 0.0
        %771 = vmatprep.subr.mxu0 0.0
        %772 = vmatpush1.msra.mxu0 0.0
        %773 = vmatprep.subr.mxu0 0.0
        %774 = vmatpush1.msra.mxu0 0.0
        %775 = vmatprep.subr.mxu0 0.0
        %776 = vmatpush1.msra.mxu0 0.0
        %777 = vmatprep.subr.mxu0 0.0
        %778 = vmatpush1.msra.mxu0 0.0
        %779 = vmatprep.subr.mxu0 0.0
        %780 = vmatpush1.msra.mxu0 0.0
        %781 = vmatprep.subr.mxu0 0.0
        %782 = vmatpush1.msra.mxu0 0.0
        %783 = vmatprep.subr.mxu0 0.0
        %784 = vmatpush1.msra.mxu0 0.0
        %785 = vmatprep.subr.mxu0 0.0
        %786 = vmatpush1.msra.mxu0 0.0
        %787 = vmatprep.subr.mxu0 0.0
        %788 = vmatpush1.msra.mxu0 0.0
        %789 = vmatprep.subr.mxu0 0.0
        %790 = vmatpush1.msra.mxu0 0.0
        %791 = vmatprep.subr.mxu0 0.0
        %792 = vmatpush1.msra.mxu0 0.0
        %793 = vmatprep.subr.mxu0 0.0
        %794 = vmatpush1.msra.mxu0 0.0
        %795 = vmatprep.subr.mxu0 0.0
        %796 = vmatpush1.msra.mxu0 0.0
        %797 = vmatprep.subr.mxu0 0.0
        %798 = vmatpush1.msra.mxu0 0.0
        %799 = vmatprep.subr.mxu0 0.0
        %800 = vmatpush1.msra.mxu0 0.0
        %801 = vmatprep.subr.mxu0 0.0
        %802 = vmatpush1.msra.mxu0 0.0
        %803 = vmatprep.subr.mxu0 0.0
        %804 = vmatpush1.msra.mxu0 0.0
        %805 = vmatprep.subr.mxu0 0.0
        %806 = vmatpush1.msra.mxu0 0.0
        %807 = vmatprep.subr.mxu0 0.0
        %808 = vmatpush1.msra.mxu0 0.0
        %809 = vmatprep.subr.mxu0 0.0
        %810 = vmatpush1.msra.mxu0 0.0
        %811 = vmatprep.subr.mxu0 0.0
        %812 = vmatpush1.msra.mxu0 0.0
        %813 = vmatprep.subr.mxu0 0.0
        %814 = vmatpush1.msra.mxu0 0.0
        %815 = vmatprep.subr.mxu0 0.0
        %816 = vmatpush1.msra.mxu0 0.0
        %817 = vmatprep.mubr.f32.mxu0 0.0
        %818 = vmatmul.mubr.f32.gmra.mrb[0].mxu0 %v742
        %v819 = vpop.f32.mrb[0].mxu0
        %v820 = vadd.f32 %v723, %v819
        %v821 = vpop.f32.mrb[0].mxu0
        %v822 = vadd.f32 %v723, %v821
        %823 = vmatprep.mubr.f32.mxu0 0.0
        %824 = vmatmul.mubr.f32.gmra.mrb[0].mxu0 %v745
        %v825 = vpop.f32.mrb[0].mxu0
        %v826 = vadd.f32 %v728, %v825
        %v827 = vpop.f32.mrb[0].mxu0
        %v828 = vadd.f32 %v728, %v827
        %829 = vmatprep.mubr.f32.mxu0 0.0
        %830 = vmatmul.mubr.f32.gmra.mrb[0].mxu0 %v748
        %v831 = vpop.f32.mrb[0].mxu0
        %v832 = vadd.f32 %v733, %v831
        %v833 = vpop.f32.mrb[0].mxu0
        %v834 = vadd.f32 %v733, %v833
        %835 = vmatprep.mubr.f32.mxu0 0.0
        %836 = vmatmul.mubr.f32.gmra.mrb[0].mxu0 %v751
        %v837 = vpop.f32.mrb[0].mxu0
        %v838 = vadd.f32 %v738, %v837
        %v839 = vpop.f32.mrb[0].mxu0
        %v840 = vadd.f32 %v738, %v839
        %841 = vdwg.mxu0
        %s842 = scalar_lea.vmem %s4, 64
        %v843 = vld [vmem:[%s842] sm:$0xff]
        %v844 = vld [vmem:[%s842 + $0x8] sm:$0xff]
        %v845 = vld [vmem:[%s842 + $0x10] sm:$0xff]
        %v846 = vld [vmem:[%s842 + $0x18] sm:$0xff]
        %v847 = vadd.f32 %v820, %v822
        %848 = vadd.xlane.f32.xlu0 %v847
        %v849 = vpop.xlane.xlu0 %848
        %v850 = vadd.f32 %v826, %v828
        %851 = vadd.xlane.f32.xlu0 %v850
        %v852 = vpop.xlane.xlu0 %851
        %v853 = vadd.f32 %v832, %v834
        %854 = vadd.xlane.f32.xlu0 %v853
        %v855 = vpop.xlane.xlu0 %854
        %v856 = vadd.f32 %v838, %v840
        %857 = vadd.xlane.f32.xlu0 %v856
        %v858 = vpop.xlane.xlu0 %857
        %v859 = vadd.f32 %v843, %v849
        %v860 = vadd.f32 %v844, %v852
        %v861 = vadd.f32 %v845, %v855
        %v862 = vadd.f32 %v846, %v858
        %vm863 = vcmask 7168
        %864 = vst.msk [vmem:[%s842] sm:$0xff] %vm863, %v859
        %865 = vst.msk [vmem:[%s842 + $0x8] sm:$0xff] %vm863, %v860
        %866 = vst.msk [vmem:[%s842 + $0x10] sm:$0xff] %vm863, %v861
        %867 = vst.msk [vmem:[%s842 + $0x18] sm:$0xff] %vm863, %v862
        %s868 = scalar_lea.vmem %s4, 96
        %v869 = vld [vmem:[%s868] sm:$0xff]
        %v870 = vld [vmem:[%s868 + $0x8] sm:$0xff]
        %v871 = vld [vmem:[%s868 + $0x10] sm:$0xff]
        %v872 = vld [vmem:[%s868 + $0x18] sm:$0xff]
        %v873 = vmul.f32 %v820, %v820
        %v874 = vmul.f32 %v822, %v822
        %v875 = vmul.f32 %v826, %v826
        %v876 = vmul.f32 %v828, %v828
        %v877 = vmul.f32 %v832, %v832
        %v878 = vmul.f32 %v834, %v834
        %v879 = vmul.f32 %v838, %v838
        %v880 = vmul.f32 %v840, %v840
        %v881 = vadd.f32 %v873, %v874
        %882 = vadd.xlane.f32.xlu0 %v881
        %v883 = vpop.xlane.xlu0 %882
        %v884 = vadd.f32 %v875, %v876
        %885 = vadd.xlane.f32.xlu0 %v884
        %v886 = vpop.xlane.xlu0 %885
        %v887 = vadd.f32 %v877, %v878
        %888 = vadd.xlane.f32.xlu0 %v887
        %v889 = vpop.xlane.xlu0 %888
        %v890 = vadd.f32 %v879, %v880
        %891 = vadd.xlane.f32.xlu0 %v890
        %v892 = vpop.xlane.xlu0 %891
        %v893 = vadd.f32 %v869, %v883
        %v894 = vadd.f32 %v870, %v886
        %v895 = vadd.f32 %v871, %v889
        %v896 = vadd.f32 %v872, %v892
        %897 = vst.msk [vmem:[%s868] sm:$0xff] %vm863, %v893
        %898 = vst.msk [vmem:[%s868 + $0x8] sm:$0xff] %vm863, %v894
        %899 = vst.msk [vmem:[%s868 + $0x10] sm:$0xff] %vm863, %v895
        %900 = vst.msk [vmem:[%s868 + $0x18] sm:$0xff] %vm863, %v896
      $region48: #{tpu_custom_call.1} parent=35 // pred_fallthru
        _
      // Predicated region
      $region49: #{tpu_custom_call.1} parent=35 // pred_check
        %p901 = pneg %p138
      $region50: #{tpu_custom_call.1} parent=35 // pred_check_branch
        %903 = sbr.rel (%p901) target = $region52
      $region51: #{tpu_custom_call.1} parent=35 // pred_region
        _
      $region52: #{tpu_custom_call.1} parent=35 // pred_fallthru
        _
      // Predicated region
      $region53: #{tpu_custom_call.1} parent=35 // pred_check
        %p904 = pneg %p138
      $region54: #{tpu_custom_call.1} parent=35 // pred_check_branch
        %906 = sbr.rel (%p904) target = $region56
      $region55: #{tpu_custom_call.1} parent=35 // pred_region
        _
      $region56: #{tpu_custom_call.1} parent=35 // pred_fallthru
        _
    $region36: #{tpu_custom_call.1} parent=5 // pred_fallthru
      _
    %p907 = scmp.le.s32.totalorder 2, %s10
    // Predicated region
    $region57: #{tpu_custom_call.1} parent=5 // pred_check
      %p908 = pneg %p907
    $region58: #{tpu_custom_call.1} parent=5 // pred_check_branch
      %910 = sbr.rel (%p908) target = $region60
    $region59: #{tpu_custom_call.1} parent=5 // pred_region
      %s911 = ssub.s32 %s10, 2
    $region60: #{tpu_custom_call.1} parent=5 // pred_fallthru
      _
  $region6: #{tpu_custom_call.1} parent=0 // loop_footer
    %s14 = sadd.s32 1, %s10
  $region7: #{tpu_custom_call.1} parent=0 // loop_footer_branch
    %9 = sbr.rel target = $region3
  $region8: #{tpu_custom_call.1} parent=0 // loop_exit
    _

</llo_original>
